<compile_context>
chip_gen: v5e
topology: v5e:2x2
jax: 0.10.0
libtpu: 0.0.40
codegen_flags: <defaults>
</compile_context>

<pallas_src>
import math

import jax
import jax.numpy as jnp
from jax.experimental import pallas as pl
from jax.experimental.pallas import tpu as pltpu

_TILE_BYTES = 4 * 1024 * 1024   # per-step, per-buffer DMA target (~4 MiB)


def _make_leaky_relu_kernel(gamma):
    gamma = float(gamma)

    def kernel(x_ref, o_ref):
        x = x_ref[...]
        o_ref[...] = jnp.where(x >= 0, x, x * gamma)

    return kernel


def _choose_tile_r(rows, lane_w, itemsize):
    """Row tile so the per-step DMA is ~_TILE_BYTES; small slabs still get a
    few pipeline steps instead of one serialized block."""
    pack = max(8, 32 // itemsize)                     # 8 f32 / 16 bf16 / 32 i8
    tile_r = (_TILE_BYTES // (lane_w * itemsize)) // pack * pack
    tile_r = max(pack, tile_r)
    if rows <= tile_r:
        # Small/medium slab: aim for ~4 grid steps so DMA and compute overlap.
        tile_r = max(pack, (pl.cdiv(rows, 4) // pack) * pack)
        if tile_r >= rows:
            tile_r = rows                             # single full-dim block
    return tile_r


def _leaky_relu_slab(x2, gamma):
    """Run the Pallas kernel over a lane-dense (rows, W) slab."""
    rows, lane_w = x2.shape
    tile_r = _choose_tile_r(rows, lane_w, x2.dtype.itemsize)
    grid = (pl.cdiv(rows, tile_r),)                   # ragged last block is clipped
    return pl.pallas_call(
        _make_leaky_relu_kernel(gamma),
        out_shape=jax.ShapeDtypeStruct((rows, lane_w), x2.dtype),
        grid_spec=pltpu.PrefetchScalarGridSpec(
            num_scalar_prefetch=0,
            grid=grid,
            in_specs=[pl.BlockSpec((tile_r, lane_w), lambda i: (i, 0))],
            out_specs=pl.BlockSpec((tile_r, lane_w), lambda i: (i, 0)),
        ),
        compiler_params=pltpu.CompilerParams(
            dimension_semantics=("parallel",),
            vmem_limit_bytes=32 * 1024 * 1024,
        ),
    )(x2)


def my_leaky_relu(x, gamma=0.2):
    """Elementwise LeakyReLU via Pallas. Accepts any shape / float dtype."""
    orig_shape = x.shape
    total = math.prod(orig_shape) if orig_shape else 1
    if total == 0:
        return x

    flat = x.reshape(-1)                              # free (bitcast)

    if total % 128 == 0:
        # Common case: widest lane width that divides total exactly ->
        # pure reshapes in/out, no pad, no trim, no extra HBM traffic.
        lane_w = 128
        for cand in (1024, 512, 256):
            if total % cand == 0:
                lane_w = cand
                break
        out = _leaky_relu_slab(flat.reshape(total // lane_w, lane_w), gamma)
        return out.reshape(orig_shape)

    # Rare misaligned case: Pallas on the 128-aligned bulk, plain jnp.where
    # on the (< 128-element) tail, then stitch back together.
    lane_w = 128
    bulk = (total // lane_w) * lane_w
    parts = []
    if bulk:
        out_bulk = _leaky_relu_slab(
            flat[:bulk].reshape(bulk // lane_w, lane_w), gamma)
        parts.append(out_bulk.reshape(-1))
    tail = flat[bulk:]
    parts.append(jnp.where(tail >= 0, tail, tail * gamma).astype(x.dtype))
    out_flat = parts[0] if len(parts) == 1 else jnp.concatenate(parts)
    return out_flat.reshape(orig_shape)


def _leaky_relu_ref(x, gamma=0.2):
    # Pure-JAX reference mirroring the PyTorch implementation exactly.
    return (x >= 0).astype(x.dtype) * x + gamma * (x < 0).astype(x.dtype) * x


if __name__ == "__main__":
    key = jax.random.PRNGKey(0)
    k0, k1, k2 = jax.random.split(key, 3)

    # NCHW conv-activation shape (128-aligned fast path, single block).
    x = jax.random.normal(k0, (2, 4, 16, 16), dtype=jnp.float32)
    y = jax.block_until_ready(my_leaky_relu(x, gamma=0.2))
    assert y.shape == x.shape and y.dtype == x.dtype
    assert jnp.allclose(y, _leaky_relu_ref(x, gamma=0.2), atol=1e-6, rtol=1e-6)

    # Medium input: exercises the multi-step (grid > 1) pipelined path.
    x_med = jax.random.normal(k1, (4, 16, 64, 64), dtype=jnp.float32)
    y_med = jax.block_until_ready(my_leaky_relu(x_med, gamma=0.2))
    assert jnp.allclose(y_med, _leaky_relu_ref(x_med, gamma=0.2),
                        atol=1e-6, rtol=1e-6)

    # Odd-sized input: exercises the misaligned bulk + tail fallback and the
    # ragged-last-block clipping.
    x_odd = jax.random.normal(k2, (3, 5, 7, 11), dtype=jnp.float32)
    y_odd = jax.block_until_ready(my_leaky_relu(x_odd, gamma=0.2))
    assert y_odd.shape == x_odd.shape
    assert jnp.allclose(y_odd, _leaky_relu_ref(x_odd, gamma=0.2),
                        atol=1e-6, rtol=1e-6)

    print("KERNEL_OK")
</pallas_src>

<mosaic_0001>
module attributes {stable_mosaic.version = 11 : i64} {
  func.func @kernel(%arg0: i32, %arg1: memref<2x1024xf32, #tpu.memory_space<vmem>>, %arg2: memref<2x1024xf32, #tpu.memory_space<vmem>>) attributes {dimension_semantics = [#tpu.dimension_semantics<parallel>], iteration_bounds = array<i64: 1>, scalar_prefetch = 0 : i64, scratch_operands = 0 : i64, tpu.core_type = #tpu.core_type<tc>, window_params = [{transform_indices = @transform_0, window_bounds = array<i64: 2, 1024>}, {transform_indices = @transform_1, window_bounds = array<i64: 2, 1024>}]} {
    %c0 = arith.constant 0 : index
    %c0_0 = arith.constant 0 : index
    %0 = vector.load %arg1[%c0, %c0_0] : memref<2x1024xf32, #tpu.memory_space<vmem>>, vector<2x1024xf32>
    %cst = arith.constant 0.000000e+00 : f32
    %1 = vector.broadcast %cst : f32 to vector<2x1024xf32>
    %2 = arith.cmpf oge, %0, %1 : vector<2x1024xf32>
    %cst_1 = arith.constant 2.000000e-01 : f32
    %3 = vector.broadcast %cst_1 : f32 to vector<2x1024xf32>
    %4 = arith.mulf %0, %3 : vector<2x1024xf32>
    %5 = arith.select %2, %0, %4 : vector<2x1024xi1>, vector<2x1024xf32>
    %c0_2 = arith.constant 0 : index
    %c0_3 = arith.constant 0 : index
    %6 = vector.load %arg2[%c0_2, %c0_3] : memref<2x1024xf32, #tpu.memory_space<vmem>>, vector<2x1024xf32>
    tpu.vector_store %arg2[%c0_2, %c0_3], %5 {strides = array<i32>} : memref<2x1024xf32, #tpu.memory_space<vmem>>, vector<2x1024xf32>,
    return
  }
  func.func @transform_0(%arg0: i32) -> (i32, i32) {
    %c0_i32 = arith.constant 0 : i32
    %c0_i32_0 = arith.constant 0 : i32
    return %arg0, %c0_i32 : i32, i32
  }
  func.func @transform_1(%arg0: i32) -> (i32, i32) {
    %c0_i32 = arith.constant 0 : i32
    %c0_i32_0 = arith.constant 0 : i32
    return %arg0, %c0_i32 : i32, i32
  }
}

</mosaic_0001>

<llo_original>
// kernel: tpu_custom_call.1
$region0: #{tpu_custom_call.1}
  #allocation0 [shape = 'u32[]', space=smem, size = 0x4, offset = 0x4, fixed_abs, tag = 'smem constant byte address 0x4 - core index']
  #allocation1 [shape = 'u32[72,128]{1,0:T(1,128)}', space=vmem, size = 0x9000, scoped, tag = 'internal scratch']
  %s0 = inlined_call_operand.hbm [shape: f32[2,1024], index: 0, kind: input, shape index: {}]
  %s1 = inlined_call_operand.hbm [shape: f32[2,1024], index: 1, kind: output, shape index: {}]
  %s2 = sld [smem:[#allocation0]]
  $region18: #{tpu_custom_call.1} parent=0
    _
  %s4 = ssub.s32 1, %s2
  %s5 = scalar_select 0, %s4, %s2
  $region1: #{tpu_custom_call.1} parent=0
    #allocation2 [shape = 'u8[8192]{0}', space=vmem, size = 0x2000, scoped, tag = 'input window, operand 0, single buffered']
    #allocation3 [shape = 's32[1]{0}', space=sflag, size = 0x4, scoped, tag = 'scoped memory for tpu_custom_call.1']
    #allocation4 [shape = 's32[1]{0}', space=sflag, size = 0x4, scoped, tag = 'scoped memory for tpu_custom_call.1']
    #allocation5 [shape = 'u8[8192]{0}', space=vmem, size = 0x2000, scoped, tag = 'output window, operand 0, single buffered']
    %6 = vsyncpa [#allocation3], 0
    %7 = vsyncpa [#allocation4], 0
    // Predicated region
    $region2: #{tpu_custom_call.1} parent=1 // pred_check
      _
    $region3: #{tpu_custom_call.1} parent=1 // pred_check_branch
      %9 = sbr.rel (0) target = $region5
    $region4: #{tpu_custom_call.1} parent=1 // pred_region
      %11 = vsyncadd [#allocation3], 0
      %s13 = sshll.u32 %s0, 4
      %s14 = int_to_ptr.hbm [resolvable:$true] %s13
      %s15 = sshll.u32 [#allocation2], 4
      %s16 = int_to_ptr.vmem [resolvable:$true] %s15
      %18 = dma.hbm_to_vmem [thread:$0]  %s14, 256, %s16, [#allocation3]
    $region5: #{tpu_custom_call.1} parent=1 // pred_fallthru
      _
    // Predicated region
    $region6: #{tpu_custom_call.1} parent=1 // pred_check
      _
    $region7: #{tpu_custom_call.1} parent=1 // pred_check_branch
      %20 = sbr.rel (0) target = $region9
    $region8: #{tpu_custom_call.1} parent=1 // pred_region
      %22 = dma.done [#allocation3], 256
    $region9: #{tpu_custom_call.1} parent=1 // pred_fallthru
      _
    %v23 = vld [vmem:[#allocation2] sm:$0xff]
    %v24 = vld [vmem:[#allocation2 + $0x8] sm:$0xff]
    %vm25 = vcmp.ge.f32.partialorder %v23, 0.0
    %vm26 = vcmp.ge.f32.partialorder %v24, 0.0
    %v27 = vmul.f32 %v23, 0.2
    %v28 = vmul.f32 %v24, 0.2
    %v29 = vsel %vm25, %v23, %v27
    %v30 = vsel %vm26, %v24, %v28
    %31 = vst [vmem:[#allocation5] sm:$0xff] %v29
    %32 = vst [vmem:[#allocation5 + $0x8] sm:$0xff] %v30
    // Predicated region
    $region10: #{tpu_custom_call.1} parent=1 // pred_check
      _
    $region11: #{tpu_custom_call.1} parent=1 // pred_check_branch
      %34 = sbr.rel (0) target = $region13
    $region12: #{tpu_custom_call.1} parent=1 // pred_region
      %36 = vsyncadd [#allocation4], 0
      %s38 = sshll.u32 [#allocation5], 4
      %s39 = int_to_ptr.vmem [resolvable:$true] %s38
      %s40 = sshll.u32 %s1, 4
      %s41 = int_to_ptr.hbm [resolvable:$true] %s40
      %43 = dma.vmem_to_hbm [thread:$0]  %s39, 256, %s41, [#allocation4]
    $region13: #{tpu_custom_call.1} parent=1 // pred_fallthru
      _
    // Predicated region
    $region14: #{tpu_custom_call.1} parent=1 // pred_check
      _
    $region15: #{tpu_custom_call.1} parent=1 // pred_check_branch
      %45 = sbr.rel (0) target = $region17
    $region16: #{tpu_custom_call.1} parent=1 // pred_region
      %47 = dma.done [#allocation4], 256
    $region17: #{tpu_custom_call.1} parent=1 // pred_fallthru
      _
    %48 = vsyncpa [#allocation3], 1
    %49 = vsyncpa [#allocation4], 1

</llo_original>
